<compile_context>
chip_gen: v7x
topology: tpu7x:2x2x1
jax: 0.10.0
libtpu: 0.0.40
codegen_flags: <defaults>
</compile_context>

<pallas_src>
import jax
import jax.numpy as jnp
from jax import lax
from jax.experimental import pallas as pl
from jax.experimental.pallas import tpu as pltpu

LN_EPS = 1e-5
OUT_ROWS = 8          # padded output feature count (real outputs in rows 0..1)
SPLIT_THRESHOLD = 256  # below this batch size a single grid step is cheapest


def _round_up(v, m):
    return ((v + m - 1) // m) * m


def policy_kernel(x_ref, w1_ref, b1_ref, g_ref, beta_ref,
                  w2_ref, b2_ref, w3_ref, b3_ref, w4_ref, b4_ref, o_ref):
    # MXU operands in bf16, accumulation and vector math in f32.
    x = x_ref[...].astype(jnp.bfloat16)

    # Linear(n -> 2n) + Tanh
    h1 = jnp.tanh(
        jnp.dot(x, w1_ref[...], preferred_element_type=jnp.float32) + b1_ref[...])

    # LayerNorm(2n): two-pass variance (cancellation-safe for saturated tanh).
    mu = jnp.mean(h1, axis=-1, keepdims=True)
    var = jnp.mean((h1 - mu) * (h1 - mu), axis=-1, keepdims=True)
    h1n = (h1 - mu) * lax.rsqrt(var + LN_EPS) * g_ref[...] + beta_ref[...]

    # Linear(2n -> 2n) + Tanh   (Dropout = identity in eval mode)
    h2 = jnp.tanh(
        jnp.dot(h1n.astype(jnp.bfloat16), w2_ref[...],
                preferred_element_type=jnp.float32) + b2_ref[...])

    # Linear(2n -> n) + Tanh    (Dropout = identity in eval mode)
    h3 = jnp.tanh(
        jnp.dot(h2.astype(jnp.bfloat16), w3_ref[...],
                preferred_element_type=jnp.float32) + b3_ref[...])

    # Linear(n -> 2), padded to OUT_ROWS columns (cols >= 2 are zero weights).
    logits = jnp.dot(h3.astype(jnp.bfloat16), w4_ref[...],
                     preferred_element_type=jnp.float32) + b4_ref[...]

    # Packed, transposed output: (OUT_ROWS, TB) with batch on the lane axis.
    # Small XLU transpose of the (TB, OUT_ROWS) slab; store is lane-dense.
    o_ref[...] = jnp.transpose(logits).astype(o_ref.dtype)


def policy_network_forward(x, params, *, batch_tile=1024):
    (w1, b1, g, beta, w2, b2, w3, b3, w4, b4) = params
    B, n = x.shape
    h = 2 * n

    # bf16 weights for the MXU (halves HBM->VMEM DMA); biases/LN stay f32.
    w1b = w1.astype(jnp.bfloat16)
    w2b = w2.astype(jnp.bfloat16)
    w3b = w3.astype(jnp.bfloat16)
    w4p = jnp.zeros((n, OUT_ROWS), jnp.bfloat16).at[:, :2].set(w4.astype(jnp.bfloat16))
    b4p = jnp.zeros((1, OUT_ROWS), jnp.float32).at[:, :2].set(b4)

    # Batch tiling.
    B8 = _round_up(B, 8)
    if B8 <= SPLIT_THRESHOLD:
        # Single grid step: block == full array, so any multiple of 8 is legal.
        TB = B8
    else:
        # >= 2 grid steps so v7x can shard across its 2 TensorCores; TB must be
        # a multiple of 128 so the (OUT_ROWS, TB) output block stays lane-dense.
        half = _round_up(pl.cdiv(B8, 2), 128)
        TB = max(128, min(_round_up(batch_tile, 128), half))
    B_pad = _round_up(B8, TB)
    grid = (B_pad // TB,)

    xp = x if B_pad == B else jnp.pad(x, ((0, B_pad - B), (0, 0)))

    weight_args = (w1b, b1, g, beta, w2b, b2, w3b, b3, w4p, b4p)

    def resident_spec(a):
        # Full-array block, constant index map -> fetched once, VMEM-resident.
        # Single-buffered: the index map never changes, so a second pipeline
        # buffer would be pure VMEM waste.
        return pl.BlockSpec(a.shape, lambda i: (0,) * a.ndim,
                            pipeline_mode=pl.Buffered(1))

    in_specs = ([pl.BlockSpec((TB, n), lambda i: (i, 0))]
                + [resident_spec(a) for a in weight_args])
    out_specs = pl.BlockSpec((OUT_ROWS, TB), lambda i: (0, i))

    # Explicit VMEM budget: weights 1x (single-buffered), x/out tiles 2x
    # (double-buffered), a handful of live activation slabs, plus headroom.
    weight_bytes = sum(int(a.size) * a.dtype.itemsize for a in weight_args)
    x_tile_bytes = TB * n * xp.dtype.itemsize
    out_tile_bytes = OUT_ROWS * TB * 4
    act_bytes = TB * h * 4
    vmem_limit = int(weight_bytes
                     + 2 * (x_tile_bytes + out_tile_bytes)
                     + 6 * act_bytes
                     + (16 << 20))            # compiler scratch headroom
    vmem_limit = min(vmem_limit, 48 << 20)    # stay under v7x's 64 MiB physical

    flops = 2 * B_pad * (n * h + h * h + h * n + n * OUT_ROWS)
    transcendentals = B_pad * (2 * h + n + 1)  # tanh x3 + rsqrt
    bytes_accessed = (int(xp.size) * xp.dtype.itemsize
                      + OUT_ROWS * B_pad * 4
                      + weight_bytes)

    out_t = pl.pallas_call(
        policy_kernel,
        out_shape=jax.ShapeDtypeStruct((OUT_ROWS, B_pad), jnp.float32),
        grid=grid,
        in_specs=in_specs,
        out_specs=out_specs,
        compiler_params=pltpu.CompilerParams(
            dimension_semantics=("parallel",),
            vmem_limit_bytes=vmem_limit),
        cost_estimate=pl.CostEstimate(
            flops=flops,
            transcendentals=transcendentals,
            bytes_accessed=bytes_accessed),
    )(xp, *weight_args)

    # Rows 0..1 of out_t are the real logits (batch on the lane axis).
    # Column-1 sigmoid applied here on just B values (moved out of the kernel).
    logits0 = out_t[0, :B]
    logits1 = jax.nn.sigmoid(out_t[1, :B])
    return jnp.stack([logits0, logits1], axis=-1)


def init_params(key, n):
    ks = jax.random.split(key, 8)
    scale = 0.1
    w1 = scale * jax.random.normal(ks[0], (n, 2 * n), jnp.float32)
    b1 = scale * jax.random.normal(ks[1], (1, 2 * n), jnp.float32)
    g = jnp.ones((1, 2 * n), jnp.float32)          # LayerNorm weight
    beta = jnp.zeros((1, 2 * n), jnp.float32)      # LayerNorm bias
    w2 = scale * jax.random.normal(ks[2], (2 * n, 2 * n), jnp.float32)
    b2 = scale * jax.random.normal(ks[3], (1, 2 * n), jnp.float32)
    w3 = scale * jax.random.normal(ks[4], (2 * n, n), jnp.float32)
    b3 = scale * jax.random.normal(ks[5], (1, n), jnp.float32)
    w4 = scale * jax.random.normal(ks[6], (n, 2), jnp.float32)
    b4 = scale * jax.random.normal(ks[7], (1, 2), jnp.float32)
    return (w1, b1, g, beta, w2, b2, w3, b3, w4, b4)


def reference_forward(x, params):
    (w1, b1, g, beta, w2, b2, w3, b3, w4, b4) = params
    h1 = jnp.tanh(x @ w1 + b1)
    mu = jnp.mean(h1, axis=-1, keepdims=True)
    var = jnp.mean((h1 - mu) ** 2, axis=-1, keepdims=True)
    h1n = (h1 - mu) / jnp.sqrt(var + LN_EPS) * g + beta
    h2 = jnp.tanh(h1n @ w2 + b2)
    h3 = jnp.tanh(h2 @ w3 + b3)
    logits = h3 @ w4 + b4
    return logits.at[:, 1].set(jax.nn.sigmoid(logits[:, 1]))


if __name__ == "__main__":
    n = 32
    B = 8
    key = jax.random.PRNGKey(0)
    kx, kp = jax.random.split(key)
    x = jax.random.normal(kx, (B, n), jnp.float32)
    params = init_params(kp, n)

    out = policy_network_forward(x, params)
    out = jax.block_until_ready(out)

    ref = reference_forward(x, params)
    assert out.shape == (B, 2), out.shape
    # bf16 matmul operands -> looser tolerance than pure-f32.
    assert jnp.allclose(out, ref, atol=2e-2, rtol=2e-2), (
        f"max err {jnp.max(jnp.abs(out - ref))}")
    print("KERNEL_OK")
</pallas_src>

<mosaic_0001>
module attributes {stable_mosaic.version = 11 : i64} {
  func.func @policy_kernel(%arg0: i32, %arg1: memref<8x32xf32, #tpu.memory_space<vmem>>, %arg2: memref<32x64xbf16, #tpu.memory_space<vmem>>, %arg3: memref<1x64xf32, #tpu.memory_space<vmem>>, %arg4: memref<1x64xf32, #tpu.memory_space<vmem>>, %arg5: memref<1x64xf32, #tpu.memory_space<vmem>>, %arg6: memref<64x64xbf16, #tpu.memory_space<vmem>>, %arg7: memref<1x64xf32, #tpu.memory_space<vmem>>, %arg8: memref<64x32xbf16, #tpu.memory_space<vmem>>, %arg9: memref<1x32xf32, #tpu.memory_space<vmem>>, %arg10: memref<32x8xbf16, #tpu.memory_space<vmem>>, %arg11: memref<1x8xf32, #tpu.memory_space<vmem>>, %arg12: memref<8x8xf32, #tpu.memory_space<vmem>>) attributes {dimension_semantics = [#tpu.dimension_semantics<parallel>], iteration_bounds = array<i64: 1>, scalar_prefetch = 0 : i64, scratch_operands = 0 : i64, tpu.core_type = #tpu.core_type<tc>, window_params = [{transform_indices = @transform_0, window_bounds = array<i64: 8, 32>}, {pipeline_mode = #tpu.pipeline_mode<synchronous>, transform_indices = @transform_1, window_bounds = array<i64: 32, 64>}, {pipeline_mode = #tpu.pipeline_mode<synchronous>, transform_indices = @transform_2, window_bounds = array<i64: 1, 64>}, {pipeline_mode = #tpu.pipeline_mode<synchronous>, transform_indices = @transform_3, window_bounds = array<i64: 1, 64>}, {pipeline_mode = #tpu.pipeline_mode<synchronous>, transform_indices = @transform_4, window_bounds = array<i64: 1, 64>}, {pipeline_mode = #tpu.pipeline_mode<synchronous>, transform_indices = @transform_5, window_bounds = array<i64: 64, 64>}, {pipeline_mode = #tpu.pipeline_mode<synchronous>, transform_indices = @transform_6, window_bounds = array<i64: 1, 64>}, {pipeline_mode = #tpu.pipeline_mode<synchronous>, transform_indices = @transform_7, window_bounds = array<i64: 64, 32>}, {pipeline_mode = #tpu.pipeline_mode<synchronous>, transform_indices = @transform_8, window_bounds = array<i64: 1, 32>}, {pipeline_mode = #tpu.pipeline_mode<synchronous>, transform_indices = @transform_9, window_bounds = array<i64: 32, 8>}, {pipeline_mode = #tpu.pipeline_mode<synchronous>, transform_indices = @transform_10, window_bounds = array<i64: 1, 8>}, {transform_indices = @transform_11, window_bounds = array<i64: 8, 8>}]} {
    %c0 = arith.constant 0 : index
    %c0_0 = arith.constant 0 : index
    %0 = vector.load %arg1[%c0, %c0_0] : memref<8x32xf32, #tpu.memory_space<vmem>>, vector<8x32xf32>
    %1 = arith.truncf %0 : vector<8x32xf32> to vector<8x32xbf16>
    %c0_1 = arith.constant 0 : index
    %c0_2 = arith.constant 0 : index
    %2 = vector.load %arg2[%c0_1, %c0_2] : memref<32x64xbf16, #tpu.memory_space<vmem>>, vector<32x64xbf16>
    %cst = arith.constant dense<0.000000e+00> : vector<8x64xf32>
    %3 = tpu.matmul %1, %2, %cst {dimension_numbers = #tpu.dot_dimension_numbers<[1], [0], [0], [1], [0, 0, 1, 1], [], []>} : vector<8x32xbf16>, vector<32x64xbf16>, vector<8x64xf32> -> vector<8x64xf32>
    %c0_3 = arith.constant 0 : index
    %c0_4 = arith.constant 0 : index
    %4 = vector.load %arg3[%c0_3, %c0_4] : memref<1x64xf32, #tpu.memory_space<vmem>>, vector<1x64xf32>
    %5 = vector.broadcast %4 : vector<1x64xf32> to vector<8x64xf32>
    %6 = arith.addf %3, %5 : vector<8x64xf32>
    %7 = math.tanh %6 : vector<8x64xf32>
    %cst_5 = arith.constant dense<0.000000e+00> : vector<8xf32>
    %8 = vector.multi_reduction <add>, %7, %cst_5 [1] : vector<8x64xf32> to vector<8xf32>
    %9 = vector.shape_cast %8 : vector<8xf32> to vector<8x1xf32>
    %cst_6 = arith.constant 6.400000e+01 : f32
    %10 = vector.broadcast %cst_6 : f32 to vector<8x1xf32>
    %11 = arith.divf %9, %10 : vector<8x1xf32>
    %12 = vector.broadcast %11 : vector<8x1xf32> to vector<8x64xf32>
    %13 = arith.subf %7, %12 : vector<8x64xf32>
    %14 = vector.broadcast %11 : vector<8x1xf32> to vector<8x64xf32>
    %15 = arith.subf %7, %14 : vector<8x64xf32>
    %16 = arith.mulf %13, %15 : vector<8x64xf32>
    %cst_7 = arith.constant dense<0.000000e+00> : vector<8xf32>
    %17 = vector.multi_reduction <add>, %16, %cst_7 [1] : vector<8x64xf32> to vector<8xf32>
    %18 = vector.shape_cast %17 : vector<8xf32> to vector<8x1xf32>
    %cst_8 = arith.constant 6.400000e+01 : f32
    %19 = vector.broadcast %cst_8 : f32 to vector<8x1xf32>
    %20 = arith.divf %18, %19 : vector<8x1xf32>
    %21 = vector.broadcast %11 : vector<8x1xf32> to vector<8x64xf32>
    %22 = arith.subf %7, %21 : vector<8x64xf32>
    %cst_9 = arith.constant 9.99999974E-6 : f32
    %23 = vector.broadcast %cst_9 : f32 to vector<8x1xf32>
    %24 = arith.addf %20, %23 : vector<8x1xf32>
    %25 = math.rsqrt %24 : vector<8x1xf32>
    %26 = vector.broadcast %25 : vector<8x1xf32> to vector<8x64xf32>
    %27 = arith.mulf %22, %26 : vector<8x64xf32>
    %c0_10 = arith.constant 0 : index
    %c0_11 = arith.constant 0 : index
    %28 = vector.load %arg4[%c0_10, %c0_11] : memref<1x64xf32, #tpu.memory_space<vmem>>, vector<1x64xf32>
    %29 = vector.broadcast %28 : vector<1x64xf32> to vector<8x64xf32>
    %30 = arith.mulf %27, %29 : vector<8x64xf32>
    %c0_12 = arith.constant 0 : index
    %c0_13 = arith.constant 0 : index
    %31 = vector.load %arg5[%c0_12, %c0_13] : memref<1x64xf32, #tpu.memory_space<vmem>>, vector<1x64xf32>
    %32 = vector.broadcast %31 : vector<1x64xf32> to vector<8x64xf32>
    %33 = arith.addf %30, %32 : vector<8x64xf32>
    %34 = arith.truncf %33 : vector<8x64xf32> to vector<8x64xbf16>
    %c0_14 = arith.constant 0 : index
    %c0_15 = arith.constant 0 : index
    %35 = vector.load %arg6[%c0_14, %c0_15] : memref<64x64xbf16, #tpu.memory_space<vmem>>, vector<64x64xbf16>
    %cst_16 = arith.constant dense<0.000000e+00> : vector<8x64xf32>
    %36 = tpu.matmul %34, %35, %cst_16 {dimension_numbers = #tpu.dot_dimension_numbers<[1], [0], [0], [1], [0, 0, 1, 1], [], []>} : vector<8x64xbf16>, vector<64x64xbf16>, vector<8x64xf32> -> vector<8x64xf32>
    %c0_17 = arith.constant 0 : index
    %c0_18 = arith.constant 0 : index
    %37 = vector.load %arg7[%c0_17, %c0_18] : memref<1x64xf32, #tpu.memory_space<vmem>>, vector<1x64xf32>
    %38 = vector.broadcast %37 : vector<1x64xf32> to vector<8x64xf32>
    %39 = arith.addf %36, %38 : vector<8x64xf32>
    %40 = math.tanh %39 : vector<8x64xf32>
    %41 = arith.truncf %40 : vector<8x64xf32> to vector<8x64xbf16>
    %c0_19 = arith.constant 0 : index
    %c0_20 = arith.constant 0 : index
    %42 = vector.load %arg8[%c0_19, %c0_20] : memref<64x32xbf16, #tpu.memory_space<vmem>>, vector<64x32xbf16>
    %cst_21 = arith.constant dense<0.000000e+00> : vector<8x32xf32>
    %43 = tpu.matmul %41, %42, %cst_21 {dimension_numbers = #tpu.dot_dimension_numbers<[1], [0], [0], [1], [0, 0, 1, 1], [], []>} : vector<8x64xbf16>, vector<64x32xbf16>, vector<8x32xf32> -> vector<8x32xf32>
    %c0_22 = arith.constant 0 : index
    %c0_23 = arith.constant 0 : index
    %44 = vector.load %arg9[%c0_22, %c0_23] : memref<1x32xf32, #tpu.memory_space<vmem>>, vector<1x32xf32>
    %45 = vector.broadcast %44 : vector<1x32xf32> to vector<8x32xf32>
    %46 = arith.addf %43, %45 : vector<8x32xf32>
    %47 = math.tanh %46 : vector<8x32xf32>
    %48 = arith.truncf %47 : vector<8x32xf32> to vector<8x32xbf16>
    %c0_24 = arith.constant 0 : index
    %c0_25 = arith.constant 0 : index
    %49 = vector.load %arg10[%c0_24, %c0_25] : memref<32x8xbf16, #tpu.memory_space<vmem>>, vector<32x8xbf16>
    %cst_26 = arith.constant dense<0.000000e+00> : vector<8x8xf32>
    %50 = tpu.matmul %48, %49, %cst_26 {dimension_numbers = #tpu.dot_dimension_numbers<[1], [0], [0], [1], [0, 0, 1, 1], [], []>} : vector<8x32xbf16>, vector<32x8xbf16>, vector<8x8xf32> -> vector<8x8xf32>
    %c0_27 = arith.constant 0 : index
    %c0_28 = arith.constant 0 : index
    %51 = vector.load %arg11[%c0_27, %c0_28] : memref<1x8xf32, #tpu.memory_space<vmem>>, vector<1x8xf32>
    %52 = vector.broadcast %51 : vector<1x8xf32> to vector<8x8xf32>
    %53 = arith.addf %50, %52 : vector<8x8xf32>
    %54 = tpu.transpose %53, [1, 0] : vector<8x8xf32> -> vector<8x8xf32>
    %c0_29 = arith.constant 0 : index
    %c0_30 = arith.constant 0 : index
    %55 = vector.load %arg12[%c0_29, %c0_30] : memref<8x8xf32, #tpu.memory_space<vmem>>, vector<8x8xf32>
    tpu.vector_store %arg12[%c0_29, %c0_30], %54 {strides = array<i32>} : memref<8x8xf32, #tpu.memory_space<vmem>>, vector<8x8xf32>,
    return
  }
  func.func @transform_0(%arg0: i32) -> (i32, i32) {
    %c0_i32 = arith.constant 0 : i32
    %c0_i32_0 = arith.constant 0 : i32
    return %arg0, %c0_i32 : i32, i32
  }
  func.func @transform_1(%arg0: i32) -> (i32, i32) {
    %c0_i32 = arith.constant 0 : i32
    %c0_i32_0 = arith.constant 0 : i32
    %c0_i32_1 = arith.constant 0 : i32
    return %c0_i32, %c0_i32_0 : i32, i32
  }
  func.func @transform_2(%arg0: i32) -> (i32, i32) {
    %c0_i32 = arith.constant 0 : i32
    %c0_i32_0 = arith.constant 0 : i32
    %c0_i32_1 = arith.constant 0 : i32
    return %c0_i32, %c0_i32_0 : i32, i32
  }
  func.func @transform_3(%arg0: i32) -> (i32, i32) {
    %c0_i32 = arith.constant 0 : i32
    %c0_i32_0 = arith.constant 0 : i32
    %c0_i32_1 = arith.constant 0 : i32
    return %c0_i32, %c0_i32_0 : i32, i32
  }
  func.func @transform_4(%arg0: i32) -> (i32, i32) {
    %c0_i32 = arith.constant 0 : i32
    %c0_i32_0 = arith.constant 0 : i32
    %c0_i32_1 = arith.constant 0 : i32
    return %c0_i32, %c0_i32_0 : i32, i32
  }
  func.func @transform_5(%arg0: i32) -> (i32, i32) {
    %c0_i32 = arith.constant 0 : i32
    %c0_i32_0 = arith.constant 0 : i32
    %c0_i32_1 = arith.constant 0 : i32
    return %c0_i32, %c0_i32_0 : i32, i32
  }
  func.func @transform_6(%arg0: i32) -> (i32, i32) {
    %c0_i32 = arith.constant 0 : i32
    %c0_i32_0 = arith.constant 0 : i32
    %c0_i32_1 = arith.constant 0 : i32
    return %c0_i32, %c0_i32_0 : i32, i32
  }
  func.func @transform_7(%arg0: i32) -> (i32, i32) {
    %c0_i32 = arith.constant 0 : i32
    %c0_i32_0 = arith.constant 0 : i32
    %c0_i32_1 = arith.constant 0 : i32
    return %c0_i32, %c0_i32_0 : i32, i32
  }
  func.func @transform_8(%arg0: i32) -> (i32, i32) {
    %c0_i32 = arith.constant 0 : i32
    %c0_i32_0 = arith.constant 0 : i32
    %c0_i32_1 = arith.constant 0 : i32
    return %c0_i32, %c0_i32_0 : i32, i32
  }
  func.func @transform_9(%arg0: i32) -> (i32, i32) {
    %c0_i32 = arith.constant 0 : i32
    %c0_i32_0 = arith.constant 0 : i32
    %c0_i32_1 = arith.constant 0 : i32
    return %c0_i32, %c0_i32_0 : i32, i32
  }
  func.func @transform_10(%arg0: i32) -> (i32, i32) {
    %c0_i32 = arith.constant 0 : i32
    %c0_i32_0 = arith.constant 0 : i32
    %c0_i32_1 = arith.constant 0 : i32
    return %c0_i32, %c0_i32_0 : i32, i32
  }
  func.func @transform_11(%arg0: i32) -> (i32, i32) {
    %c0_i32 = arith.constant 0 : i32
    %c0_i32_0 = arith.constant 0 : i32
    return %c0_i32, %arg0 : i32, i32
  }
}

</mosaic_0001>

<llo_original>
// kernel: tpu_custom_call.1
$region0: #{tpu_custom_call.1}
  #allocation0 [shape = 'u32[]', space=smem, size = 0x4, offset = 0x4, fixed_abs, tag = 'smem constant byte address 0x4 - core index']
  #allocation1 [shape = 'u32[144,128]{1,0:T(1,128)}', space=vmem, size = 0x12000, scoped, tag = 'internal scratch']
  %s0 = inlined_call_operand.vmem [shape: f32[8,32], index: 0, kind: input, shape index: {}]
  %s1 = inlined_call_operand.vmem [shape: bf16[32,64], index: 1, kind: input, shape index: {}]
  %s2 = inlined_call_operand.vmem [shape: f32[1,64], index: 2, kind: input, shape index: {}]
  %s3 = inlined_call_operand.vmem [shape: f32[1,64], index: 3, kind: input, shape index: {}]
  %s4 = inlined_call_operand.vmem [shape: f32[1,64], index: 4, kind: input, shape index: {}]
  %s5 = inlined_call_operand.vmem [shape: bf16[64,64], index: 5, kind: input, shape index: {}]
  %s6 = inlined_call_operand.vmem [shape: f32[1,64], index: 6, kind: input, shape index: {}]
  %s7 = inlined_call_operand.vmem [shape: bf16[64,32], index: 7, kind: input, shape index: {}]
  %s8 = inlined_call_operand.vmem [shape: f32[1,32], index: 8, kind: input, shape index: {}]
  %s9 = inlined_call_operand.vmem [shape: bf16[32,8], index: 9, kind: input, shape index: {}]
  %s10 = inlined_call_operand.vmem [shape: f32[1,8], index: 10, kind: input, shape index: {}]
  %s11 = inlined_call_operand.hbm [shape: f32[8,8], index: 11, kind: output, shape index: {}]
  %s12 = sld [smem:[#allocation0]]
  $region54: #{tpu_custom_call.1} parent=0
    _
  %s14 = ssub.s32 1, %s12
  %s15 = scalar_select 0, %s14, %s12
  $region1: #{tpu_custom_call.1} parent=0
    #allocation2 [shape = 'u8[4096]{0}', space=vmem, size = 0x1000, scoped, tag = 'output window, operand 0, single buffered']
    #allocation3 [shape = 's32[1]{0}', space=sflag, size = 0x4, scoped, tag = 'scoped memory for tpu_custom_call.1']
    %16 = vsyncpa [#allocation3], 0
    // Predicated region
    $region2: #{tpu_custom_call.1} parent=1 // pred_check
      _
    $region3: #{tpu_custom_call.1} parent=1 // pred_check_branch
      %18 = sbr.rel (0) target = $region5
    $region4: #{tpu_custom_call.1} parent=1 // pred_region
      _
    $region5: #{tpu_custom_call.1} parent=1 // pred_fallthru
      _
    // Predicated region
    $region6: #{tpu_custom_call.1} parent=1 // pred_check
      _
    $region7: #{tpu_custom_call.1} parent=1 // pred_check_branch
      %20 = sbr.rel (0) target = $region9
    $region8: #{tpu_custom_call.1} parent=1 // pred_region
      _
    $region9: #{tpu_custom_call.1} parent=1 // pred_fallthru
      _
    // Predicated region
    $region10: #{tpu_custom_call.1} parent=1 // pred_check
      _
    $region11: #{tpu_custom_call.1} parent=1 // pred_check_branch
      %22 = sbr.rel (0) target = $region13
    $region12: #{tpu_custom_call.1} parent=1 // pred_region
      _
    $region13: #{tpu_custom_call.1} parent=1 // pred_fallthru
      _
    // Predicated region
    $region14: #{tpu_custom_call.1} parent=1 // pred_check
      _
    $region15: #{tpu_custom_call.1} parent=1 // pred_check_branch
      %24 = sbr.rel (0) target = $region17
    $region16: #{tpu_custom_call.1} parent=1 // pred_region
      _
    $region17: #{tpu_custom_call.1} parent=1 // pred_fallthru
      _
    // Predicated region
    $region18: #{tpu_custom_call.1} parent=1 // pred_check
      _
    $region19: #{tpu_custom_call.1} parent=1 // pred_check_branch
      %26 = sbr.rel (0) target = $region21
    $region20: #{tpu_custom_call.1} parent=1 // pred_region
      _
    $region21: #{tpu_custom_call.1} parent=1 // pred_fallthru
      _
    // Predicated region
    $region22: #{tpu_custom_call.1} parent=1 // pred_check
      _
    $region23: #{tpu_custom_call.1} parent=1 // pred_check_branch
      %28 = sbr.rel (0) target = $region25
    $region24: #{tpu_custom_call.1} parent=1 // pred_region
      _
    $region25: #{tpu_custom_call.1} parent=1 // pred_fallthru
      _
    // Predicated region
    $region26: #{tpu_custom_call.1} parent=1 // pred_check
      _
    $region27: #{tpu_custom_call.1} parent=1 // pred_check_branch
      %30 = sbr.rel (0) target = $region29
    $region28: #{tpu_custom_call.1} parent=1 // pred_region
      _
    $region29: #{tpu_custom_call.1} parent=1 // pred_fallthru
      _
    // Predicated region
    $region30: #{tpu_custom_call.1} parent=1 // pred_check
      _
    $region31: #{tpu_custom_call.1} parent=1 // pred_check_branch
      %32 = sbr.rel (0) target = $region33
    $region32: #{tpu_custom_call.1} parent=1 // pred_region
      _
    $region33: #{tpu_custom_call.1} parent=1 // pred_fallthru
      _
    // Predicated region
    $region34: #{tpu_custom_call.1} parent=1 // pred_check
      _
    $region35: #{tpu_custom_call.1} parent=1 // pred_check_branch
      %34 = sbr.rel (0) target = $region37
    $region36: #{tpu_custom_call.1} parent=1 // pred_region
      _
    $region37: #{tpu_custom_call.1} parent=1 // pred_fallthru
      _
    // Predicated region
    $region38: #{tpu_custom_call.1} parent=1 // pred_check
      _
    $region39: #{tpu_custom_call.1} parent=1 // pred_check_branch
      %36 = sbr.rel (0) target = $region41
    $region40: #{tpu_custom_call.1} parent=1 // pred_region
      _
    $region41: #{tpu_custom_call.1} parent=1 // pred_fallthru
      _
    // Predicated region
    $region42: #{tpu_custom_call.1} parent=1 // pred_check
      _
    $region43: #{tpu_custom_call.1} parent=1 // pred_check_branch
      %38 = sbr.rel (0) target = $region45
    $region44: #{tpu_custom_call.1} parent=1 // pred_region
      _
    $region45: #{tpu_custom_call.1} parent=1 // pred_fallthru
      _
    %v40 = vld [vmem:[%s0] sm:$0xff]
    %v41 = vpack.c.bf16 %v40, %v40
    %v42 = vld [vmem:[%s1] sm:$0xf]
    %v43 = vld [vmem:[%s1 + $0x4] sm:$0xf]
    %v44 = vld [vmem:[%s1 + $0x8] sm:$0xf]
    %v45 = vld [vmem:[%s1 + $0xc] sm:$0xf]
    %v46 = vld [vmem:[%s2] sm:$0x1]
    %v48 = vlaneseq
    %v49 = vshrl.u32 %v48, 7
    %v50 = vsub.s32 0, %v49
    %v51 = vrot.slane %v46, %v50
    %v57 = vunpack.c.l.b16 %v42
    %v58 = vunpack.c.l.b16 %v43
    %v59 = vunpack.c.l.b16 %v44
    %v60 = vunpack.c.l.b16 %v45
    %v61 = vpack.c.b16 %v58, %v57
    %v62 = vpack.c.b16 %v60, %v59
    %vm65 = vcmask 261120
    %v67 = vsel %vm65, %v41, 0
    %69 = vmatprep.subr.bf16.mxu0 0
    %70 = vmatpush1.bf16.msra.mxu0 %v61
    %71 = vmatprep.subr.bf16.mxu0 0
    %72 = vmatpush1.bf16.msra.mxu0 %v62
    %73 = vmatprep.subr.bf16.mxu0 0
    %74 = vmatpush1.bf16.msra.mxu0 0
    %75 = vmatprep.subr.bf16.mxu0 0
    %76 = vmatpush1.bf16.msra.mxu0 0
    %77 = vmatprep.subr.bf16.mxu0 0
    %78 = vmatpush1.bf16.msra.mxu0 0
    %79 = vmatprep.subr.bf16.mxu0 0
    %80 = vmatpush1.bf16.msra.mxu0 0
    %81 = vmatprep.subr.bf16.mxu0 0
    %82 = vmatpush1.bf16.msra.mxu0 0
    %83 = vmatprep.subr.bf16.mxu0 0
    %84 = vmatpush1.bf16.msra.mxu0 0
    %85 = vmatprep.subr.bf16.mxu0 0
    %86 = vmatpush1.bf16.msra.mxu0 0
    %87 = vmatprep.subr.bf16.mxu0 0
    %88 = vmatpush1.bf16.msra.mxu0 0
    %89 = vmatprep.subr.bf16.mxu0 0
    %90 = vmatpush1.bf16.msra.mxu0 0
    %91 = vmatprep.subr.bf16.mxu0 0
    %92 = vmatpush1.bf16.msra.mxu0 0
    %93 = vmatprep.subr.bf16.mxu0 0
    %94 = vmatpush1.bf16.msra.mxu0 0
    %95 = vmatprep.subr.bf16.mxu0 0
    %96 = vmatpush1.bf16.msra.mxu0 0
    %97 = vmatprep.subr.bf16.mxu0 0
    %98 = vmatpush1.bf16.msra.mxu0 0
    %99 = vmatprep.subr.bf16.mxu0 0
    %100 = vmatpush1.bf16.msra.mxu0 0
    %101 = vmatprep.mubr.bf16.mxu0 0
    %102 = vmatmul.mubr.bf16.gmra.mrb[0].mxu0 %v67
    %v103 = vpop.f32.mrb[0].mxu0
    %v104 = vadd.f32 %v51, %v103
    %v105 = vpop.f32.mrb[0].mxu0
    %v106 = vpop.f32.mrb[0].mxu0
    %v107 = vpop.f32.mrb[0].mxu0
    %108 = vdwg.mxu0
    %v109 = vtanh.pop %v104
    %vm110 = vcmask 523264
    %v111 = vsel %vm110, %v109, 0.0
    %112 = vadd.xlane.f32.xlu0 %v111
    %v113 = vpop.xlane.xlu0 %112
    %v114 = vrcp.pop 64.0
    %v115 = vmul.f32 %v113, %v114
    %v116 = vsub.f32 %v109, %v115
    %v117 = vmul.f32 %v116, %v116
    %v118 = vsel %vm110, %v117, 0.0
    %119 = vadd.xlane.f32.xlu0 %v118
    %v120 = vpop.xlane.xlu0 %119
    %v121 = vmul.f32 %v120, %v114
    %v122 = vadd.f32 %v121, 1e-05
    %v123 = vrsqrt.pop %v122
    %v124 = vmul.f32 %v116, %v123
    %v125 = vld [vmem:[%s3] sm:$0x1]
    %v127 = vlaneseq
    %v128 = vshrl.u32 %v127, 7
    %v129 = vsub.s32 0, %v128
    %v130 = vrot.slane %v125, %v129
    %v132 = vmul.f32 %v124, %v130
    %v133 = vld [vmem:[%s4] sm:$0x1]
    %v135 = vlaneseq
    %v136 = vshrl.u32 %v135, 7
    %v137 = vsub.s32 0, %v136
    %v138 = vrot.slane %v133, %v137
    %v140 = vadd.f32 %v132, %v138
    %v141 = vpack.c.bf16 %v140, %v140
    %v142 = vld [vmem:[%s5] sm:$0xf]
    %v143 = vld [vmem:[%s5 + $0x4] sm:$0xf]
    %v144 = vld [vmem:[%s5 + $0x8] sm:$0xf]
    %v145 = vld [vmem:[%s5 + $0xc] sm:$0xf]
    %v146 = vld [vmem:[%s5 + $0x10] sm:$0xf]
    %v147 = vld [vmem:[%s5 + $0x14] sm:$0xf]
    %v148 = vld [vmem:[%s5 + $0x18] sm:$0xf]
    %v149 = vld [vmem:[%s5 + $0x1c] sm:$0xf]
    %v150 = vld [vmem:[%s6] sm:$0x1]
    %v152 = vlaneseq
    %v153 = vshrl.u32 %v152, 7
    %v154 = vsub.s32 0, %v153
    %v155 = vrot.slane %v150, %v154
    %v165 = vunpack.c.l.b16 %v142
    %v166 = vunpack.c.l.b16 %v143
    %v167 = vunpack.c.l.b16 %v144
    %v168 = vunpack.c.l.b16 %v145
    %v169 = vunpack.c.l.b16 %v146
    %v170 = vunpack.c.l.b16 %v147
    %v171 = vunpack.c.l.b16 %v148
    %v172 = vunpack.c.l.b16 %v149
    %v173 = vpack.c.b16 %v166, %v165
    %v174 = vpack.c.b16 %v168, %v167
    %v175 = vpack.c.b16 %v170, %v169
    %v176 = vpack.c.b16 %v172, %v171
    %v182 = vsel %vm110, %v141, 0
    %184 = vmatprep.subr.bf16.mxu0 0
    %185 = vmatpush1.bf16.msra.mxu0 %v173
    %186 = vmatprep.subr.bf16.mxu0 0
    %187 = vmatpush1.bf16.msra.mxu0 %v174
    %188 = vmatprep.subr.bf16.mxu0 0
    %189 = vmatpush1.bf16.msra.mxu0 %v175
    %190 = vmatprep.subr.bf16.mxu0 0
    %191 = vmatpush1.bf16.msra.mxu0 %v176
    %192 = vmatprep.subr.bf16.mxu0 0
    %193 = vmatpush1.bf16.msra.mxu0 0
    %194 = vmatprep.subr.bf16.mxu0 0
    %195 = vmatpush1.bf16.msra.mxu0 0
    %196 = vmatprep.subr.bf16.mxu0 0
    %197 = vmatpush1.bf16.msra.mxu0 0
    %198 = vmatprep.subr.bf16.mxu0 0
    %199 = vmatpush1.bf16.msra.mxu0 0
    %200 = vmatprep.subr.bf16.mxu0 0
    %201 = vmatpush1.bf16.msra.mxu0 0
    %202 = vmatprep.subr.bf16.mxu0 0
    %203 = vmatpush1.bf16.msra.mxu0 0
    %204 = vmatprep.subr.bf16.mxu0 0
    %205 = vmatpush1.bf16.msra.mxu0 0
    %206 = vmatprep.subr.bf16.mxu0 0
    %207 = vmatpush1.bf16.msra.mxu0 0
    %208 = vmatprep.subr.bf16.mxu0 0
    %209 = vmatpush1.bf16.msra.mxu0 0
    %210 = vmatprep.subr.bf16.mxu0 0
    %211 = vmatpush1.bf16.msra.mxu0 0
    %212 = vmatprep.subr.bf16.mxu0 0
    %213 = vmatpush1.bf16.msra.mxu0 0
    %214 = vmatprep.subr.bf16.mxu0 0
    %215 = vmatpush1.bf16.msra.mxu0 0
    %216 = vmatprep.mubr.bf16.mxu0 0
    %217 = vmatmul.mubr.bf16.gmra.mrb[0].mxu0 %v182
    %v218 = vpop.f32.mrb[0].mxu0
    %v219 = vadd.f32 %v155, %v218
    %v220 = vpop.f32.mrb[0].mxu0
    %v221 = vpop.f32.mrb[0].mxu0
    %v222 = vpop.f32.mrb[0].mxu0
    %223 = vdwg.mxu0
    %v224 = vtanh.pop %v219
    %v225 = vpack.c.bf16 %v224, %v224
    %v226 = vld [vmem:[%s7] sm:$0xf]
    %v227 = vld [vmem:[%s7 + $0x4] sm:$0xf]
    %v228 = vld [vmem:[%s7 + $0x8] sm:$0xf]
    %v229 = vld [vmem:[%s7 + $0xc] sm:$0xf]
    %v230 = vld [vmem:[%s7 + $0x10] sm:$0xf]
    %v231 = vld [vmem:[%s7 + $0x14] sm:$0xf]
    %v232 = vld [vmem:[%s7 + $0x18] sm:$0xf]
    %v233 = vld [vmem:[%s7 + $0x1c] sm:$0xf]
    %v234 = vld [vmem:[%s8] sm:$0x1]
    %v236 = vlaneseq
    %v237 = vshrl.u32 %v236, 7
    %v238 = vsub.s32 0, %v237
    %v239 = vrot.slane %v234, %v238
    %v249 = vunpack.c.l.b16 %v226
    %v250 = vunpack.c.l.b16 %v227
    %v251 = vunpack.c.l.b16 %v228
    %v252 = vunpack.c.l.b16 %v229
    %v253 = vunpack.c.l.b16 %v230
    %v254 = vunpack.c.l.b16 %v231
    %v255 = vunpack.c.l.b16 %v232
    %v256 = vunpack.c.l.b16 %v233
    %v257 = vpack.c.b16 %v250, %v249
    %v258 = vpack.c.b16 %v252, %v251
    %v259 = vpack.c.b16 %v254, %v253
    %v260 = vpack.c.b16 %v256, %v255
    %v266 = vsel %vm110, %v225, 0
    %268 = vmatprep.subr.bf16.mxu0 0
    %269 = vmatpush1.bf16.msra.mxu0 %v257
    %270 = vmatprep.subr.bf16.mxu0 0
    %271 = vmatpush1.bf16.msra.mxu0 %v258
    %272 = vmatprep.subr.bf16.mxu0 0
    %273 = vmatpush1.bf16.msra.mxu0 %v259
    %274 = vmatprep.subr.bf16.mxu0 0
    %275 = vmatpush1.bf16.msra.mxu0 %v260
    %276 = vmatprep.subr.bf16.mxu0 0
    %277 = vmatpush1.bf16.msra.mxu0 0
    %278 = vmatprep.subr.bf16.mxu0 0
    %279 = vmatpush1.bf16.msra.mxu0 0
    %280 = vmatprep.subr.bf16.mxu0 0
    %281 = vmatpush1.bf16.msra.mxu0 0
    %282 = vmatprep.subr.bf16.mxu0 0
    %283 = vmatpush1.bf16.msra.mxu0 0
    %284 = vmatprep.subr.bf16.mxu0 0
    %285 = vmatpush1.bf16.msra.mxu0 0
    %286 = vmatprep.subr.bf16.mxu0 0
    %287 = vmatpush1.bf16.msra.mxu0 0
    %288 = vmatprep.subr.bf16.mxu0 0
    %289 = vmatpush1.bf16.msra.mxu0 0
    %290 = vmatprep.subr.bf16.mxu0 0
    %291 = vmatpush1.bf16.msra.mxu0 0
    %292 = vmatprep.subr.bf16.mxu0 0
    %293 = vmatpush1.bf16.msra.mxu0 0
    %294 = vmatprep.subr.bf16.mxu0 0
    %295 = vmatpush1.bf16.msra.mxu0 0
    %296 = vmatprep.subr.bf16.mxu0 0
    %297 = vmatpush1.bf16.msra.mxu0 0
    %298 = vmatprep.subr.bf16.mxu0 0
    %299 = vmatpush1.bf16.msra.mxu0 0
    %300 = vmatprep.mubr.bf16.mxu0 0
    %301 = vmatmul.mubr.bf16.gmra.mrb[0].mxu0 %v266
    %v302 = vpop.f32.mrb[0].mxu0
    %v303 = vadd.f32 %v239, %v302
    %v304 = vpop.f32.mrb[0].mxu0
    %v305 = vpop.f32.mrb[0].mxu0
    %v306 = vpop.f32.mrb[0].mxu0
    %307 = vdwg.mxu0
    %v308 = vtanh.pop %v303
    %v309 = vpack.c.bf16 %v308, %v308
    %v310 = vld [vmem:[%s9] sm:$0xf]
    %v311 = vld [vmem:[%s9 + $0x4] sm:$0xf]
    %v312 = vld [vmem:[%s9 + $0x8] sm:$0xf]
    %v313 = vld [vmem:[%s9 + $0xc] sm:$0xf]
    %v314 = vld [vmem:[%s10] sm:$0x1]
    %v316 = vlaneseq
    %v317 = vshrl.u32 %v316, 7
    %v318 = vsub.s32 0, %v317
    %v319 = vrot.slane %v314, %v318
    %v325 = vunpack.c.l.b16 %v310
    %v326 = vunpack.c.l.b16 %v311
    %v327 = vunpack.c.l.b16 %v312
    %v328 = vunpack.c.l.b16 %v313
    %v329 = vpack.c.b16 %v326, %v325
    %v330 = vpack.c.b16 %v328, %v327
    %v334 = vsel %vm65, %v309, 0
    %336 = vmatprep.subr.bf16.mxu0 0
    %337 = vmatpush1.bf16.msra.mxu0 %v329
    %338 = vmatprep.subr.bf16.mxu0 0
    %339 = vmatpush1.bf16.msra.mxu0 %v330
    %340 = vmatprep.subr.bf16.mxu0 0
    %341 = vmatpush1.bf16.msra.mxu0 0
    %342 = vmatprep.subr.bf16.mxu0 0
    %343 = vmatpush1.bf16.msra.mxu0 0
    %344 = vmatprep.subr.bf16.mxu0 0
    %345 = vmatpush1.bf16.msra.mxu0 0
    %346 = vmatprep.subr.bf16.mxu0 0
    %347 = vmatpush1.bf16.msra.mxu0 0
    %348 = vmatprep.subr.bf16.mxu0 0
    %349 = vmatpush1.bf16.msra.mxu0 0
    %350 = vmatprep.subr.bf16.mxu0 0
    %351 = vmatpush1.bf16.msra.mxu0 0
    %352 = vmatprep.subr.bf16.mxu0 0
    %353 = vmatpush1.bf16.msra.mxu0 0
    %354 = vmatprep.subr.bf16.mxu0 0
    %355 = vmatpush1.bf16.msra.mxu0 0
    %356 = vmatprep.subr.bf16.mxu0 0
    %357 = vmatpush1.bf16.msra.mxu0 0
    %358 = vmatprep.subr.bf16.mxu0 0
    %359 = vmatpush1.bf16.msra.mxu0 0
    %360 = vmatprep.subr.bf16.mxu0 0
    %361 = vmatpush1.bf16.msra.mxu0 0
    %362 = vmatprep.subr.bf16.mxu0 0
    %363 = vmatpush1.bf16.msra.mxu0 0
    %364 = vmatprep.subr.bf16.mxu0 0
    %365 = vmatpush1.bf16.msra.mxu0 0
    %366 = vmatprep.subr.bf16.mxu0 0
    %367 = vmatpush1.bf16.msra.mxu0 0
    %368 = vmatprep.mubr.bf16.mxu0 0
    %369 = vmatmul.mubr.bf16.gmra.mrb[0].mxu0 %v334
    %v370 = vpop.f32.mrb[0].mxu0
    %v371 = vadd.f32 %v319, %v370
    %v372 = vpop.f32.mrb[0].mxu0
    %v373 = vpop.f32.mrb[0].mxu0
    %v374 = vpop.f32.mrb[0].mxu0
    %375 = vdwg.mxu0
    %376 = vxpose.xlu0.b32.start [1/16] %v371, 128
    %377 = vxpose.xlu0.b32.cont [2/16] 0.0, 128
    %378 = vxpose.xlu0.b32.cont [3/16] 0.0, 128
    %379 = vxpose.xlu0.b32.cont [4/16] 0.0, 128
    %380 = vxpose.xlu0.b32.cont [5/16] 0.0, 128
    %381 = vxpose.xlu0.b32.cont [6/16] 0.0, 128
    %382 = vxpose.xlu0.b32.cont [7/16] 0.0, 128
    %383 = vxpose.xlu0.b32.cont [8/16] 0.0, 128
    %384 = vxpose.xlu0.b32.cont [9/16] 0.0, 128
    %385 = vxpose.xlu0.b32.cont [10/16] 0.0, 128
    %386 = vxpose.xlu0.b32.cont [11/16] 0.0, 128
    %387 = vxpose.xlu0.b32.cont [12/16] 0.0, 128
    %388 = vxpose.xlu0.b32.cont [13/16] 0.0, 128
    %389 = vxpose.xlu0.b32.cont [14/16] 0.0, 128
    %390 = vxpose.xlu0.b32.cont [15/16] 0.0, 128
    %391 = vxpose.xlu0.b32.end [16/16] 0.0, 128
    %v392 = vpop.trf.xlu0
    %v393 = vpop.trf.xlu0
    %v394 = vpop.trf.xlu0
    %v395 = vpop.trf.xlu0
    %v396 = vpop.trf.xlu0
    %v397 = vpop.trf.xlu0
    %v398 = vpop.trf.xlu0
    %v399 = vpop.trf.xlu0
    %v400 = vpop.trf.xlu0
    %v401 = vpop.trf.xlu0
    %v402 = vpop.trf.xlu0
    %v403 = vpop.trf.xlu0
    %v404 = vpop.trf.xlu0
    %v405 = vpop.trf.xlu0
    %v406 = vpop.trf.xlu0
    %v407 = vpop.trf.xlu0
    %vm408 = vcmask 64512
    %409 = vst.msk [vmem:[#allocation2] sm:$0xff] %vm408, %v392
    // Predicated region
    $region46: #{tpu_custom_call.1} parent=1 // pred_check
      _
    $region47: #{tpu_custom_call.1} parent=1 // pred_check_branch
      %411 = sbr.rel (0) target = $region49
    $region48: #{tpu_custom_call.1} parent=1 // pred_region
      %s413 = ssub.s32 128, 128
      %414 = vsyncadd [#allocation3], %s413
      %s416 = sshll.u32 [#allocation2], 4
      %s417 = int_to_ptr.vmem [resolvable:$true] %s416
      %419 = dma.vmem_to_hbm [thread:$0]  %s417, 128, %s11, [#allocation3]
    $region49: #{tpu_custom_call.1} parent=1 // pred_fallthru
      _
    // Predicated region
    $region50: #{tpu_custom_call.1} parent=1 // pred_check
      _
    $region51: #{tpu_custom_call.1} parent=1 // pred_check_branch
      %421 = sbr.rel (0) target = $region53
    $region52: #{tpu_custom_call.1} parent=1 // pred_region
      %422 = dma.done [#allocation3], 128
    $region53: #{tpu_custom_call.1} parent=1 // pred_fallthru
      _
    %423 = vsyncpa [#allocation3], 1

</llo_original>
